<compile_context>
chip_gen: v6e
topology: v6e:2x2x1
jax: 0.10.0
libtpu: 0.0.40
codegen_flags: <defaults>
</compile_context>

<pallas_src>
import jax
import jax.numpy as jnp
from jax.experimental import pallas as pl
from jax.experimental.pallas import tpu as pltpu


# ----------------------------------------------------------------------------- kernel


def _encoder_lstm_kernel(x_ref, len_ref, wih_ref, whh_ref, bias_ref,
                         out_ref, h_out_ref, c_out_ref,
                         h_scr, c_scr, xp_scr):
    """One time-chunk of the LSTM recurrence; h/c carried in VMEM scratch."""
    tT, B, E = x_ref.shape
    H = whh_ref.shape[0]
    G = 4 * H
    pid = pl.program_id(0)

    @pl.when(pid == 0)
    def _init():
        h_scr[...] = jnp.zeros_like(h_scr)
        c_scr[...] = jnp.zeros_like(c_scr)

    # Fused input projection for the whole chunk: one MXU call on the
    # (tT*B, E) slab (the x-path has no sequential dependence); bias folded in.
    # B % 8 == 0 so the leading-dim merge/split reshapes are layout-free.
    x2d = x_ref[...].reshape(tT * B, E)
    xp = jnp.dot(x2d, wih_ref[...], preferred_element_type=jnp.float32)
    xp_scr[...] = xp.reshape(tT, B, G) + bias_ref[...]

    lens = len_ref[...]                                 # (B, 1) int32
    whh = whh_ref[...]                                  # (H, 4H) bf16, resident

    # Per-lane constants for the single-pass activation:
    #   sigmoid(x) = 0.5*tanh(0.5*x) + 0.5   (i, f, o lanes)
    #   tanh(x)    = 1.0*tanh(1.0*x) + 0.0   (g lanes)
    lane = jax.lax.broadcasted_iota(jnp.int32, (1, G), 1)
    is_g = (lane >= 2 * H) & (lane < 3 * H)
    act_scale = jnp.where(is_g, 1.0, 0.5).astype(jnp.float32)
    act_bias = jnp.where(is_g, 0.0, 0.5).astype(jnp.float32)

    t0 = pid * tT

    def step(t, carry):
        h_prev, c_prev = carry
        # gates = x_t @ W_ih^T + b  (precomputed per chunk)  +  h_prev @ W_hh^T
        gates = xp_scr[t] + jnp.dot(h_prev.astype(jnp.bfloat16), whh,
                                    preferred_element_type=jnp.float32)
        # One EUP push for all four gate activations.
        act = jnp.tanh(gates * act_scale) * act_scale + act_bias
        i_g = act[:, 0 * H:1 * H]
        f_g = act[:, 1 * H:2 * H]
        g_g = act[:, 2 * H:3 * H]
        o_g = act[:, 3 * H:4 * H]

        c_new = f_g * c_prev + i_g * g_g
        h_new = o_g * jnp.tanh(c_new)

        valid = (t0 + t) < lens                          # (B, 1) bool
        h_next = jnp.where(valid, h_new, h_prev)         # freeze state past src_len
        c_next = jnp.where(valid, c_new, c_prev)
        # pad_packed_sequence: outputs are zero for t >= src_len[b]
        out_ref[t] = jnp.where(valid, h_new, 0.0).astype(out_ref.dtype)
        # TODO(synk): for small H (<128 lanes) pack the chunk output lane-dense
        # ((tT, B*H)) before storing; at realistic H rows are already lane-dense.
        return h_next, c_next

    h_fin, c_fin = jax.lax.fori_loop(0, tT, step, (h_scr[...], c_scr[...]),
                                     unroll=True)
    h_scr[...] = h_fin
    c_scr[...] = c_fin

    # TODO(synk): hold W_hh in MXU weight registers across steps via
    # pltpu.matmul_push_rhs / matmul_acc_lhs once shapes are production-sized.

    @pl.when(pid == pl.num_programs(0) - 1)
    def _finalize():
        h_out_ref[0] = h_fin.astype(h_out_ref.dtype)
        c_out_ref[0] = c_fin.astype(c_out_ref.dtype)


# ----------------------------------------------------------------------------- wrapper


def _round_up(n, m):
    return -(-n // m) * m


def _vmem_budget_bytes(tT, B_pad, E, H):
    """Approximate VMEM footprint: lane-padded, double-buffered streamed blocks."""
    lane = lambda n: _round_up(n, 128)
    G = 4 * H
    x_blk = 2 * tT * B_pad * lane(E) * 2          # bf16 input chunk, double-buffered
    out_blk = 2 * tT * B_pad * lane(H) * 4        # f32 output chunk, double-buffered
    hc_out = 2 * B_pad * lane(H) * 4              # resident hidden/cell blocks
    scratch = (tT * B_pad * lane(G) + 2 * B_pad * lane(H)) * 4
    consts = (_round_up(E, 8) + _round_up(H, 8)) * lane(G) * 2 \
        + lane(G) * 4 + B_pad * lane(1) * 4       # W_ih^T, W_hh^T, bias, lens
    return x_blk + out_blk + hc_out + scratch + consts


def _pick_chunk(T, B_pad, E, H, vmem_target_bytes=24 << 20):
    """Largest power-of-two time chunk that fits the VMEM target (sized for
    v7x's 64 MiB physical / 32 MiB default-scoped VMEM)."""
    tT, cand = 1, 1
    while cand <= max(T, 1):
        if _vmem_budget_bytes(cand, B_pad, E, H) <= vmem_target_bytes:
            tT = cand
        cand *= 2
    return tT


def encoder_lstm_pallas(x_emb, src_len, w_ih, w_hh, b_ih, b_hh, *, chunk_T=None):
    """x_emb: (T, B, E) float; src_len: (B,) int.

    Returns (outputs (T,B,H), hidden (1,B,H), cell (1,B,H)), matching
    torch.nn.LSTM after pack_padded_sequence / pad_packed_sequence.
    """
    T, B, E = x_emb.shape
    H = w_hh.shape[1]
    G = 4 * H
    B_pad = _round_up(B, 8)                    # sublane-align the batch dimension

    if chunk_T is None:
        chunk_T = _pick_chunk(T, B_pad, E, H)
    tT = max(1, min(int(chunk_T), T))
    T_pad = _round_up(T, tT)

    x = x_emb.astype(jnp.bfloat16)             # bf16 stream; accumulation stays f32
    lens = src_len.astype(jnp.int32)[:, None]  # (B, 1)
    if B_pad != B:
        x = jnp.pad(x, ((0, 0), (0, B_pad - B), (0, 0)))
        lens = jnp.pad(lens, ((0, B_pad - B), (0, 0)))        # padded rows: len 0
    if T_pad != T:
        x = jnp.pad(x, ((0, T_pad - T), (0, 0), (0, 0)))      # padded steps invalid

    wih_t = w_ih.T.astype(jnp.bfloat16)                       # (E, 4H)
    whh_t = w_hh.T.astype(jnp.bfloat16)                       # (H, 4H)
    bias = (b_ih + b_hh).astype(jnp.float32).reshape(1, G)

    grid = (T_pad // tT,)
    vmem_limit = int(min(max(4 * _vmem_budget_bytes(tT, B_pad, E, H), 8 << 20),
                         100 << 20))

    outputs, hidden, cell = pl.pallas_call(
        _encoder_lstm_kernel,
        out_shape=(
            jax.ShapeDtypeStruct((T_pad, B_pad, H), jnp.float32),
            jax.ShapeDtypeStruct((1, B_pad, H), jnp.float32),
            jax.ShapeDtypeStruct((1, B_pad, H), jnp.float32),
        ),
        grid_spec=pltpu.PrefetchScalarGridSpec(
            num_scalar_prefetch=0,
            grid=grid,
            in_specs=[
                pl.BlockSpec((tT, B_pad, E), lambda i: (i, 0, 0)),   # x_emb chunk
                pl.BlockSpec((B_pad, 1), lambda i: (0, 0)),          # src_len
                pl.BlockSpec((E, G), lambda i: (0, 0)),              # W_ih^T
                pl.BlockSpec((H, G), lambda i: (0, 0)),              # W_hh^T
                pl.BlockSpec((1, G), lambda i: (0, 0)),              # b_ih + b_hh
            ],
            out_specs=[
                pl.BlockSpec((tT, B_pad, H), lambda i: (i, 0, 0)),   # outputs chunk
                pl.BlockSpec((1, B_pad, H), lambda i: (0, 0, 0)),    # hidden (resident)
                pl.BlockSpec((1, B_pad, H), lambda i: (0, 0, 0)),    # cell (resident)
            ],
            scratch_shapes=[
                pltpu.VMEM((B_pad, H), jnp.float32),                 # h state
                pltpu.VMEM((B_pad, H), jnp.float32),                 # c state
                pltpu.VMEM((tT, B_pad, G), jnp.float32),             # chunk x-projection
            ],
        ),
        compiler_params=pltpu.CompilerParams(
            dimension_semantics=("arbitrary",),   # serial recurrence over time
            vmem_limit_bytes=vmem_limit,
        ),
    )(x, lens, wih_t, whh_t, bias)

    # TODO(synk): on v7x add a leading "parallel" batch grid axis (>=128 rows per
    # tile) so the two TensorCores split independent sequences.
    return outputs[:T, :B], hidden[:, :B], cell[:, :B]


def encoder_forward(src, src_len, params, *, chunk_T=None):
    """Full Encoder.forward (eval mode): embedding -> dropout(identity) -> LSTM."""
    x_emb = params["embedding"][src]            # (T, B, E); gather stays in plain JAX
    # self.dropout: eval mode -> identity.
    return encoder_lstm_pallas(x_emb, src_len,
                               params["w_ih"], params["w_hh"],
                               params["b_ih"], params["b_hh"],
                               chunk_T=chunk_T)


# ----------------------------------------------------------------------------- reference


def _lstm_reference(x_emb, src_len, w_ih, w_hh, b_ih, b_hh):
    """Pure-JAX reference mirroring the kernel's numeric path (bf16 matmul
    operands, f32 accumulation and gate math)."""
    T, B, E = x_emb.shape
    H = w_hh.shape[1]
    wih_t = w_ih.T.astype(jnp.bfloat16)
    whh_t = w_hh.T.astype(jnp.bfloat16)
    bias = (b_ih + b_hh).astype(jnp.float32)
    x = x_emb.astype(jnp.bfloat16)

    def step(carry, inp):
        h, c = carry
        x_t, t = inp
        gates = (jnp.dot(x_t, wih_t, preferred_element_type=jnp.float32) + bias
                 + jnp.dot(h.astype(jnp.bfloat16), whh_t,
                           preferred_element_type=jnp.float32))
        i = jax.nn.sigmoid(gates[:, :H])
        f = jax.nn.sigmoid(gates[:, H:2 * H])
        g = jnp.tanh(gates[:, 2 * H:3 * H])
        o = jax.nn.sigmoid(gates[:, 3 * H:])
        c_new = f * c + i * g
        h_new = o * jnp.tanh(c_new)
        valid = (t < src_len)[:, None]
        h2 = jnp.where(valid, h_new, h)
        c2 = jnp.where(valid, c_new, c)
        out = jnp.where(valid, h_new, 0.0)
        return (h2, c2), out

    init = (jnp.zeros((B, H), jnp.float32), jnp.zeros((B, H), jnp.float32))
    (h, c), outs = jax.lax.scan(step, init, (x, jnp.arange(T)))
    return outs, h[None], c[None]


def init_params(key, vocab_size, emb_dim, hidden_dim):
    """Deterministic init mirroring nn.Embedding / nn.LSTM parameter shapes."""
    k_emb, k0, k1, k2, k3 = jax.random.split(key, 5)
    bound = 1.0 / jnp.sqrt(hidden_dim)
    return {
        "embedding": jax.random.normal(k_emb, (vocab_size, emb_dim), jnp.float32),
        "w_ih": jax.random.uniform(k0, (4 * hidden_dim, emb_dim), jnp.float32, -bound, bound),
        "w_hh": jax.random.uniform(k1, (4 * hidden_dim, hidden_dim), jnp.float32, -bound, bound),
        "b_ih": jax.random.uniform(k2, (4 * hidden_dim,), jnp.float32, -bound, bound),
        "b_hh": jax.random.uniform(k3, (4 * hidden_dim,), jnp.float32, -bound, bound),
    }


if __name__ == "__main__":
    # hparams: src_vocab_size=16, emb_dim=8, hidden_dim=32, n_layers=1,
    #          rnn_type='lstm', bidirectional=False, use_one_hot=False, dropout (eval).
    # TODO(synk): gru / vanilla-rnn, multi-layer and bidirectional variants of the
    #             module are not instantiated here.
    T, B, VOCAB, EMB, HID = 8, 4, 16, 8, 32

    key = jax.random.PRNGKey(0)
    k_src, k_par = jax.random.split(key)

    src = jax.random.randint(k_src, (T, B), 0, VOCAB, dtype=jnp.int32)   # (T, B) time-major
    src_len = jnp.array([T, 5, 3, 6], dtype=jnp.int32)                   # max == T

    params = init_params(k_par, VOCAB, EMB, HID)

    # chunk_T=4 -> grid=(2,): exercises the cross-chunk h/c state carry.
    fwd = jax.jit(lambda s, l, p: encoder_forward(s, l, p, chunk_T=4))
    outputs, hidden, cell = fwd(src, src_len, params)
    jax.block_until_ready((outputs, hidden, cell))

    # correctness check against a pure-JAX reference of the same numeric path
    x_emb = params["embedding"][src]
    ref_out, ref_h, ref_c = _lstm_reference(x_emb, src_len,
                                            params["w_ih"], params["w_hh"],
                                            params["b_ih"], params["b_hh"])
    assert outputs.shape == (T, B, HID)
    assert hidden.shape == (1, B, HID) and cell.shape == (1, B, HID)
    assert jnp.allclose(outputs, ref_out, atol=2e-3, rtol=2e-3)
    assert jnp.allclose(hidden, ref_h, atol=2e-3, rtol=2e-3)
    assert jnp.allclose(cell, ref_c, atol=2e-3, rtol=2e-3)

    print("KERNEL_OK")
</pallas_src>

<mosaic_0001>
module attributes {stable_mosaic.version = 11 : i64} {
  func.func @_encoder_lstm_kernel(%arg0: i32, %arg1: memref<4x8x8xbf16, #tpu.memory_space<vmem>>, %arg2: memref<8x1xi32, #tpu.memory_space<vmem>>, %arg3: memref<8x128xbf16, #tpu.memory_space<vmem>>, %arg4: memref<32x128xbf16, #tpu.memory_space<vmem>>, %arg5: memref<1x128xf32, #tpu.memory_space<vmem>>, %arg6: memref<4x8x32xf32, #tpu.memory_space<vmem>>, %arg7: memref<1x8x32xf32, #tpu.memory_space<vmem>>, %arg8: memref<1x8x32xf32, #tpu.memory_space<vmem>>, %arg9: memref<8x32xf32, #tpu.memory_space<vmem>>, %arg10: memref<8x32xf32, #tpu.memory_space<vmem>>, %arg11: memref<4x8x128xf32, #tpu.memory_space<vmem>>) attributes {dimension_semantics = [#tpu.dimension_semantics<arbitrary>], iteration_bounds = array<i64: 2>, scalar_prefetch = 0 : i64, scratch_operands = 3 : i64, tpu.core_type = #tpu.core_type<tc>, window_params = [{transform_indices = @transform_0, window_bounds = array<i64: 4, 8, 8>}, {pipeline_mode = #tpu.pipeline_mode<synchronous>, transform_indices = @transform_1, window_bounds = array<i64: 8, 1>}, {pipeline_mode = #tpu.pipeline_mode<synchronous>, transform_indices = @transform_2, window_bounds = array<i64: 8, 128>}, {pipeline_mode = #tpu.pipeline_mode<synchronous>, transform_indices = @transform_3, window_bounds = array<i64: 32, 128>}, {pipeline_mode = #tpu.pipeline_mode<synchronous>, transform_indices = @transform_4, window_bounds = array<i64: 1, 128>}, {transform_indices = @transform_5, window_bounds = array<i64: 4, 8, 32>}, {pipeline_mode = #tpu.pipeline_mode<synchronous>, transform_indices = @transform_6, window_bounds = array<i64: 1, 8, 32>}, {pipeline_mode = #tpu.pipeline_mode<synchronous>, transform_indices = @transform_7, window_bounds = array<i64: 1, 8, 32>}]} {
    %c0_i32 = arith.constant 0 : i32
    %0 = arith.cmpi eq, %arg0, %c0_i32 : i32
    %1 = arith.extui %0 : i1 to i32
    %c0_i32_0 = arith.constant 0 : i32
    %2 = arith.cmpi ne, %1, %c0_i32_0 : i32
    scf.if %2 {
      %cst_54 = arith.constant 0.000000e+00 : f32
      %191 = vector.broadcast %cst_54 : f32 to vector<8x32xf32>
      %c0_55 = arith.constant 0 : index
      %c0_56 = arith.constant 0 : index
      %192 = vector.load %arg9[%c0_55, %c0_56] : memref<8x32xf32, #tpu.memory_space<vmem>>, vector<8x32xf32>
      tpu.vector_store %arg9[%c0_55, %c0_56], %191 {strides = array<i32>} : memref<8x32xf32, #tpu.memory_space<vmem>>, vector<8x32xf32>,
      %cst_57 = arith.constant 0.000000e+00 : f32
      %193 = vector.broadcast %cst_57 : f32 to vector<8x32xf32>
      %c0_58 = arith.constant 0 : index
      %c0_59 = arith.constant 0 : index
      %194 = vector.load %arg10[%c0_58, %c0_59] : memref<8x32xf32, #tpu.memory_space<vmem>>, vector<8x32xf32>
      tpu.vector_store %arg10[%c0_58, %c0_59], %193 {strides = array<i32>} : memref<8x32xf32, #tpu.memory_space<vmem>>, vector<8x32xf32>,
    } else {
    }
    %c0 = arith.constant 0 : index
    %c0_1 = arith.constant 0 : index
    %c0_2 = arith.constant 0 : index
    %3 = vector.load %arg1[%c0, %c0_1, %c0_2] : memref<4x8x8xbf16, #tpu.memory_space<vmem>>, vector<4x8x8xbf16>
    %4 = vector.shape_cast %3 : vector<4x8x8xbf16> to vector<32x8xbf16>
    %c0_3 = arith.constant 0 : index
    %c0_4 = arith.constant 0 : index
    %5 = vector.load %arg3[%c0_3, %c0_4] : memref<8x128xbf16, #tpu.memory_space<vmem>>, vector<8x128xbf16>
    %cst = arith.constant dense<0.000000e+00> : vector<32x128xf32>
    %6 = tpu.matmul %4, %5, %cst {dimension_numbers = #tpu.dot_dimension_numbers<[1], [0], [0], [1], [0, 0, 1, 1], [], []>} : vector<32x8xbf16>, vector<8x128xbf16>, vector<32x128xf32> -> vector<32x128xf32>
    %7 = vector.shape_cast %6 : vector<32x128xf32> to vector<4x8x128xf32>
    %c0_5 = arith.constant 0 : index
    %c0_6 = arith.constant 0 : index
    %8 = vector.load %arg5[%c0_5, %c0_6] : memref<1x128xf32, #tpu.memory_space<vmem>>, vector<1x128xf32>
    %9 = vector.shape_cast %8 : vector<1x128xf32> to vector<1x1x128xf32>
    %10 = vector.broadcast %9 : vector<1x1x128xf32> to vector<4x8x128xf32>
    %11 = arith.addf %7, %10 : vector<4x8x128xf32>
    %c0_7 = arith.constant 0 : index
    %c0_8 = arith.constant 0 : index
    %c0_9 = arith.constant 0 : index
    %12 = vector.load %arg11[%c0_7, %c0_8, %c0_9] : memref<4x8x128xf32, #tpu.memory_space<vmem>>, vector<4x8x128xf32>
    tpu.vector_store %arg11[%c0_7, %c0_8, %c0_9], %11 {strides = array<i32>} : memref<4x8x128xf32, #tpu.memory_space<vmem>>, vector<4x8x128xf32>,
    %c0_10 = arith.constant 0 : index
    %c0_11 = arith.constant 0 : index
    %13 = vector.load %arg2[%c0_10, %c0_11] : memref<8x1xi32, #tpu.memory_space<vmem>>, vector<8x1xi32>
    %c0_12 = arith.constant 0 : index
    %c0_13 = arith.constant 0 : index
    %14 = vector.load %arg4[%c0_12, %c0_13] : memref<32x128xbf16, #tpu.memory_space<vmem>>, vector<32x128xbf16>
    %15 = tpu.iota {dimensions = array<i32: 1>} : vector<1x128xi32>
    %c64_i32 = arith.constant 64 : i32
    %16 = vector.broadcast %c64_i32 : i32 to vector<1x128xi32>
    %17 = arith.cmpi sge, %15, %16 : vector<1x128xi32>
    %c96_i32 = arith.constant 96 : i32
    %18 = vector.broadcast %c96_i32 : i32 to vector<1x128xi32>
    %19 = arith.cmpi slt, %15, %18 : vector<1x128xi32>
    %20 = arith.andi %17, %19 : vector<1x128xi1>
    %cst_14 = arith.constant 1.000000e+00 : f32
    %cst_15 = arith.constant 5.000000e-01 : f32
    %21 = vector.broadcast %cst_14 : f32 to vector<1x128xf32>
    %22 = vector.broadcast %cst_15 : f32 to vector<1x128xf32>
    %23 = arith.select %20, %21, %22 : vector<1x128xi1>, vector<1x128xf32>
    %cst_16 = arith.constant 0.000000e+00 : f32
    %cst_17 = arith.constant 5.000000e-01 : f32
    %24 = vector.broadcast %cst_16 : f32 to vector<1x128xf32>
    %25 = vector.broadcast %cst_17 : f32 to vector<1x128xf32>
    %26 = arith.select %20, %24, %25 : vector<1x128xi1>, vector<1x128xf32>
    %c4_i32 = arith.constant 4 : i32
    %27 = arith.muli %arg0, %c4_i32 : i32
    %c0_18 = arith.constant 0 : index
    %c0_19 = arith.constant 0 : index
    %28 = vector.load %arg9[%c0_18, %c0_19] : memref<8x32xf32, #tpu.memory_space<vmem>>, vector<8x32xf32>
    %c0_20 = arith.constant 0 : index
    %c0_21 = arith.constant 0 : index
    %29 = vector.load %arg10[%c0_20, %c0_21] : memref<8x32xf32, #tpu.memory_space<vmem>>, vector<8x32xf32>
    %c0_i32_22 = arith.constant 0 : i32
    %30 = arith.index_cast %c0_i32_22 : i32 to index
    %c0_23 = arith.constant 0 : index
    %c0_24 = arith.constant 0 : index
    %31 = vector.load %arg11[%30, %c0_23, %c0_24] : memref<4x8x128xf32, #tpu.memory_space<vmem>>, vector<1x8x128xf32>
    %32 = vector.shape_cast %31 : vector<1x8x128xf32> to vector<8x128xf32>
    %33 = arith.truncf %28 : vector<8x32xf32> to vector<8x32xbf16>
    %cst_25 = arith.constant dense<0.000000e+00> : vector<8x128xf32>
    %34 = tpu.matmul %33, %14, %cst_25 {dimension_numbers = #tpu.dot_dimension_numbers<[1], [0], [0], [1], [0, 0, 1, 1], [], []>} : vector<8x32xbf16>, vector<32x128xbf16>, vector<8x128xf32> -> vector<8x128xf32>
    %35 = arith.addf %32, %34 : vector<8x128xf32>
    %36 = vector.broadcast %23 : vector<1x128xf32> to vector<8x128xf32>
    %37 = arith.mulf %35, %36 : vector<8x128xf32>
    %38 = math.tanh %37 : vector<8x128xf32>
    %39 = vector.broadcast %23 : vector<1x128xf32> to vector<8x128xf32>
    %40 = arith.mulf %38, %39 : vector<8x128xf32>
    %41 = vector.broadcast %26 : vector<1x128xf32> to vector<8x128xf32>
    %42 = arith.addf %40, %41 : vector<8x128xf32>
    %43 = vector.extract_strided_slice %42 {offsets = [0, 0], sizes = [8, 32], strides = [1, 1]} : vector<8x128xf32> to vector<8x32xf32>
    %44 = vector.extract_strided_slice %42 {offsets = [0, 32], sizes = [8, 32], strides = [1, 1]} : vector<8x128xf32> to vector<8x32xf32>
    %45 = vector.extract_strided_slice %42 {offsets = [0, 64], sizes = [8, 32], strides = [1, 1]} : vector<8x128xf32> to vector<8x32xf32>
    %46 = vector.extract_strided_slice %42 {offsets = [0, 96], sizes = [8, 32], strides = [1, 1]} : vector<8x128xf32> to vector<8x32xf32>
    %47 = arith.mulf %44, %29 : vector<8x32xf32>
    %48 = arith.mulf %43, %45 : vector<8x32xf32>
    %49 = arith.addf %47, %48 : vector<8x32xf32>
    %50 = math.tanh %49 : vector<8x32xf32>
    %51 = arith.mulf %46, %50 : vector<8x32xf32>
    %52 = arith.addi %27, %c0_i32_22 : i32
    %53 = vector.broadcast %52 : i32 to vector<8x1xi32>
    %54 = arith.cmpi slt, %53, %13 : vector<8x1xi32>
    %55 = vector.shape_cast %54 : vector<8x1xi1> to vector<8x1xi1>
    %56 = vector.broadcast %55 : vector<8x1xi1> to vector<8x32xi1>
    %57 = arith.select %56, %51, %28 : vector<8x32xi1>, vector<8x32xf32>
    %58 = vector.shape_cast %54 : vector<8x1xi1> to vector<8x1xi1>
    %59 = vector.broadcast %58 : vector<8x1xi1> to vector<8x32xi1>
    %60 = arith.select %59, %49, %29 : vector<8x32xi1>, vector<8x32xf32>
    %cst_26 = arith.constant 0.000000e+00 : f32
    %61 = vector.shape_cast %54 : vector<8x1xi1> to vector<8x1xi1>
    %62 = vector.broadcast %61 : vector<8x1xi1> to vector<8x32xi1>
    %63 = vector.broadcast %cst_26 : f32 to vector<8x32xf32>
    %64 = arith.select %62, %51, %63 : vector<8x32xi1>, vector<8x32xf32>
    %65 = arith.index_cast %c0_i32_22 : i32 to index
    %c0_27 = arith.constant 0 : index
    %c0_28 = arith.constant 0 : index
    %66 = vector.load %arg6[%65, %c0_27, %c0_28] : memref<4x8x32xf32, #tpu.memory_space<vmem>>, vector<1x8x32xf32>
    %67 = vector.shape_cast %66 : vector<1x8x32xf32> to vector<8x32xf32>
    %68 = vector.shape_cast %64 : vector<8x32xf32> to vector<1x8x32xf32>
    tpu.vector_store %arg6[%65, %c0_27, %c0_28], %68 {strides = array<i32>} : memref<4x8x32xf32, #tpu.memory_space<vmem>>, vector<1x8x32xf32>,
    %c1_i32 = arith.constant 1 : i32
    %69 = arith.index_cast %c1_i32 : i32 to index
    %c0_29 = arith.constant 0 : index
    %c0_30 = arith.constant 0 : index
    %70 = vector.load %arg11[%69, %c0_29, %c0_30] : memref<4x8x128xf32, #tpu.memory_space<vmem>>, vector<1x8x128xf32>
    %71 = vector.shape_cast %70 : vector<1x8x128xf32> to vector<8x128xf32>
    %72 = arith.truncf %57 : vector<8x32xf32> to vector<8x32xbf16>
    %cst_31 = arith.constant dense<0.000000e+00> : vector<8x128xf32>
    %73 = tpu.matmul %72, %14, %cst_31 {dimension_numbers = #tpu.dot_dimension_numbers<[1], [0], [0], [1], [0, 0, 1, 1], [], []>} : vector<8x32xbf16>, vector<32x128xbf16>, vector<8x128xf32> -> vector<8x128xf32>
    %74 = arith.addf %71, %73 : vector<8x128xf32>
    %75 = vector.broadcast %23 : vector<1x128xf32> to vector<8x128xf32>
    %76 = arith.mulf %74, %75 : vector<8x128xf32>
    %77 = math.tanh %76 : vector<8x128xf32>
    %78 = vector.broadcast %23 : vector<1x128xf32> to vector<8x128xf32>
    %79 = arith.mulf %77, %78 : vector<8x128xf32>
    %80 = vector.broadcast %26 : vector<1x128xf32> to vector<8x128xf32>
    %81 = arith.addf %79, %80 : vector<8x128xf32>
    %82 = vector.extract_strided_slice %81 {offsets = [0, 0], sizes = [8, 32], strides = [1, 1]} : vector<8x128xf32> to vector<8x32xf32>
    %83 = vector.extract_strided_slice %81 {offsets = [0, 32], sizes = [8, 32], strides = [1, 1]} : vector<8x128xf32> to vector<8x32xf32>
    %84 = vector.extract_strided_slice %81 {offsets = [0, 64], sizes = [8, 32], strides = [1, 1]} : vector<8x128xf32> to vector<8x32xf32>
    %85 = vector.extract_strided_slice %81 {offsets = [0, 96], sizes = [8, 32], strides = [1, 1]} : vector<8x128xf32> to vector<8x32xf32>
    %86 = arith.mulf %83, %60 : vector<8x32xf32>
    %87 = arith.mulf %82, %84 : vector<8x32xf32>
    %88 = arith.addf %86, %87 : vector<8x32xf32>
    %89 = math.tanh %88 : vector<8x32xf32>
    %90 = arith.mulf %85, %89 : vector<8x32xf32>
    %91 = arith.addi %27, %c1_i32 : i32
    %92 = vector.broadcast %91 : i32 to vector<8x1xi32>
    %93 = arith.cmpi slt, %92, %13 : vector<8x1xi32>
    %94 = vector.shape_cast %93 : vector<8x1xi1> to vector<8x1xi1>
    %95 = vector.broadcast %94 : vector<8x1xi1> to vector<8x32xi1>
    %96 = arith.select %95, %90, %57 : vector<8x32xi1>, vector<8x32xf32>
    %97 = vector.shape_cast %93 : vector<8x1xi1> to vector<8x1xi1>
    %98 = vector.broadcast %97 : vector<8x1xi1> to vector<8x32xi1>
    %99 = arith.select %98, %88, %60 : vector<8x32xi1>, vector<8x32xf32>
    %cst_32 = arith.constant 0.000000e+00 : f32
    %100 = vector.shape_cast %93 : vector<8x1xi1> to vector<8x1xi1>
    %101 = vector.broadcast %100 : vector<8x1xi1> to vector<8x32xi1>
    %102 = vector.broadcast %cst_32 : f32 to vector<8x32xf32>
    %103 = arith.select %101, %90, %102 : vector<8x32xi1>, vector<8x32xf32>
    %104 = arith.index_cast %c1_i32 : i32 to index
    %c0_33 = arith.constant 0 : index
    %c0_34 = arith.constant 0 : index
    %105 = vector.load %arg6[%104, %c0_33, %c0_34] : memref<4x8x32xf32, #tpu.memory_space<vmem>>, vector<1x8x32xf32>
    %106 = vector.shape_cast %105 : vector<1x8x32xf32> to vector<8x32xf32>
    %107 = vector.shape_cast %103 : vector<8x32xf32> to vector<1x8x32xf32>
    tpu.vector_store %arg6[%104, %c0_33, %c0_34], %107 {strides = array<i32>} : memref<4x8x32xf32, #tpu.memory_space<vmem>>, vector<1x8x32xf32>,
    %c2_i32 = arith.constant 2 : i32
    %108 = arith.index_cast %c2_i32 : i32 to index
    %c0_35 = arith.constant 0 : index
    %c0_36 = arith.constant 0 : index
    %109 = vector.load %arg11[%108, %c0_35, %c0_36] : memref<4x8x128xf32, #tpu.memory_space<vmem>>, vector<1x8x128xf32>
    %110 = vector.shape_cast %109 : vector<1x8x128xf32> to vector<8x128xf32>
    %111 = arith.truncf %96 : vector<8x32xf32> to vector<8x32xbf16>
    %cst_37 = arith.constant dense<0.000000e+00> : vector<8x128xf32>
    %112 = tpu.matmul %111, %14, %cst_37 {dimension_numbers = #tpu.dot_dimension_numbers<[1], [0], [0], [1], [0, 0, 1, 1], [], []>} : vector<8x32xbf16>, vector<32x128xbf16>, vector<8x128xf32> -> vector<8x128xf32>
    %113 = arith.addf %110, %112 : vector<8x128xf32>
    %114 = vector.broadcast %23 : vector<1x128xf32> to vector<8x128xf32>
    %115 = arith.mulf %113, %114 : vector<8x128xf32>
    %116 = math.tanh %115 : vector<8x128xf32>
    %117 = vector.broadcast %23 : vector<1x128xf32> to vector<8x128xf32>
    %118 = arith.mulf %116, %117 : vector<8x128xf32>
    %119 = vector.broadcast %26 : vector<1x128xf32> to vector<8x128xf32>
    %120 = arith.addf %118, %119 : vector<8x128xf32>
    %121 = vector.extract_strided_slice %120 {offsets = [0, 0], sizes = [8, 32], strides = [1, 1]} : vector<8x128xf32> to vector<8x32xf32>
    %122 = vector.extract_strided_slice %120 {offsets = [0, 32], sizes = [8, 32], strides = [1, 1]} : vector<8x128xf32> to vector<8x32xf32>
    %123 = vector.extract_strided_slice %120 {offsets = [0, 64], sizes = [8, 32], strides = [1, 1]} : vector<8x128xf32> to vector<8x32xf32>
    %124 = vector.extract_strided_slice %120 {offsets = [0, 96], sizes = [8, 32], strides = [1, 1]} : vector<8x128xf32> to vector<8x32xf32>
    %125 = arith.mulf %122, %99 : vector<8x32xf32>
    %126 = arith.mulf %121, %123 : vector<8x32xf32>
    %127 = arith.addf %125, %126 : vector<8x32xf32>
    %128 = math.tanh %127 : vector<8x32xf32>
    %129 = arith.mulf %124, %128 : vector<8x32xf32>
    %130 = arith.addi %27, %c2_i32 : i32
    %131 = vector.broadcast %130 : i32 to vector<8x1xi32>
    %132 = arith.cmpi slt, %131, %13 : vector<8x1xi32>
    %133 = vector.shape_cast %132 : vector<8x1xi1> to vector<8x1xi1>
    %134 = vector.broadcast %133 : vector<8x1xi1> to vector<8x32xi1>
    %135 = arith.select %134, %129, %96 : vector<8x32xi1>, vector<8x32xf32>
    %136 = vector.shape_cast %132 : vector<8x1xi1> to vector<8x1xi1>
    %137 = vector.broadcast %136 : vector<8x1xi1> to vector<8x32xi1>
    %138 = arith.select %137, %127, %99 : vector<8x32xi1>, vector<8x32xf32>
    %cst_38 = arith.constant 0.000000e+00 : f32
    %139 = vector.shape_cast %132 : vector<8x1xi1> to vector<8x1xi1>
    %140 = vector.broadcast %139 : vector<8x1xi1> to vector<8x32xi1>
    %141 = vector.broadcast %cst_38 : f32 to vector<8x32xf32>
    %142 = arith.select %140, %129, %141 : vector<8x32xi1>, vector<8x32xf32>
    %143 = arith.index_cast %c2_i32 : i32 to index
    %c0_39 = arith.constant 0 : index
    %c0_40 = arith.constant 0 : index
    %144 = vector.load %arg6[%143, %c0_39, %c0_40] : memref<4x8x32xf32, #tpu.memory_space<vmem>>, vector<1x8x32xf32>
    %145 = vector.shape_cast %144 : vector<1x8x32xf32> to vector<8x32xf32>
    %146 = vector.shape_cast %142 : vector<8x32xf32> to vector<1x8x32xf32>
    tpu.vector_store %arg6[%143, %c0_39, %c0_40], %146 {strides = array<i32>} : memref<4x8x32xf32, #tpu.memory_space<vmem>>, vector<1x8x32xf32>,
    %c3_i32 = arith.constant 3 : i32
    %147 = arith.index_cast %c3_i32 : i32 to index
    %c0_41 = arith.constant 0 : index
    %c0_42 = arith.constant 0 : index
    %148 = vector.load %arg11[%147, %c0_41, %c0_42] : memref<4x8x128xf32, #tpu.memory_space<vmem>>, vector<1x8x128xf32>
    %149 = vector.shape_cast %148 : vector<1x8x128xf32> to vector<8x128xf32>
    %150 = arith.truncf %135 : vector<8x32xf32> to vector<8x32xbf16>
    %cst_43 = arith.constant dense<0.000000e+00> : vector<8x128xf32>
    %151 = tpu.matmul %150, %14, %cst_43 {dimension_numbers = #tpu.dot_dimension_numbers<[1], [0], [0], [1], [0, 0, 1, 1], [], []>} : vector<8x32xbf16>, vector<32x128xbf16>, vector<8x128xf32> -> vector<8x128xf32>
    %152 = arith.addf %149, %151 : vector<8x128xf32>
    %153 = vector.broadcast %23 : vector<1x128xf32> to vector<8x128xf32>
    %154 = arith.mulf %152, %153 : vector<8x128xf32>
    %155 = math.tanh %154 : vector<8x128xf32>
    %156 = vector.broadcast %23 : vector<1x128xf32> to vector<8x128xf32>
    %157 = arith.mulf %155, %156 : vector<8x128xf32>
    %158 = vector.broadcast %26 : vector<1x128xf32> to vector<8x128xf32>
    %159 = arith.addf %157, %158 : vector<8x128xf32>
    %160 = vector.extract_strided_slice %159 {offsets = [0, 0], sizes = [8, 32], strides = [1, 1]} : vector<8x128xf32> to vector<8x32xf32>
    %161 = vector.extract_strided_slice %159 {offsets = [0, 32], sizes = [8, 32], strides = [1, 1]} : vector<8x128xf32> to vector<8x32xf32>
    %162 = vector.extract_strided_slice %159 {offsets = [0, 64], sizes = [8, 32], strides = [1, 1]} : vector<8x128xf32> to vector<8x32xf32>
    %163 = vector.extract_strided_slice %159 {offsets = [0, 96], sizes = [8, 32], strides = [1, 1]} : vector<8x128xf32> to vector<8x32xf32>
    %164 = arith.mulf %161, %138 : vector<8x32xf32>
    %165 = arith.mulf %160, %162 : vector<8x32xf32>
    %166 = arith.addf %164, %165 : vector<8x32xf32>
    %167 = math.tanh %166 : vector<8x32xf32>
    %168 = arith.mulf %163, %167 : vector<8x32xf32>
    %169 = arith.addi %27, %c3_i32 : i32
    %170 = vector.broadcast %169 : i32 to vector<8x1xi32>
    %171 = arith.cmpi slt, %170, %13 : vector<8x1xi32>
    %172 = vector.shape_cast %171 : vector<8x1xi1> to vector<8x1xi1>
    %173 = vector.broadcast %172 : vector<8x1xi1> to vector<8x32xi1>
    %174 = arith.select %173, %168, %135 : vector<8x32xi1>, vector<8x32xf32>
    %175 = vector.shape_cast %171 : vector<8x1xi1> to vector<8x1xi1>
    %176 = vector.broadcast %175 : vector<8x1xi1> to vector<8x32xi1>
    %177 = arith.select %176, %166, %138 : vector<8x32xi1>, vector<8x32xf32>
    %cst_44 = arith.constant 0.000000e+00 : f32
    %178 = vector.shape_cast %171 : vector<8x1xi1> to vector<8x1xi1>
    %179 = vector.broadcast %178 : vector<8x1xi1> to vector<8x32xi1>
    %180 = vector.broadcast %cst_44 : f32 to vector<8x32xf32>
    %181 = arith.select %179, %168, %180 : vector<8x32xi1>, vector<8x32xf32>
    %182 = arith.index_cast %c3_i32 : i32 to index
    %c0_45 = arith.constant 0 : index
    %c0_46 = arith.constant 0 : index
    %183 = vector.load %arg6[%182, %c0_45, %c0_46] : memref<4x8x32xf32, #tpu.memory_space<vmem>>, vector<1x8x32xf32>
    %184 = vector.shape_cast %183 : vector<1x8x32xf32> to vector<8x32xf32>
    %185 = vector.shape_cast %181 : vector<8x32xf32> to vector<1x8x32xf32>
    tpu.vector_store %arg6[%182, %c0_45, %c0_46], %185 {strides = array<i32>} : memref<4x8x32xf32, #tpu.memory_space<vmem>>, vector<1x8x32xf32>,
    %c4_i32_47 = arith.constant 4 : i32
    %c0_48 = arith.constant 0 : index
    %c0_49 = arith.constant 0 : index
    %186 = vector.load %arg9[%c0_48, %c0_49] : memref<8x32xf32, #tpu.memory_space<vmem>>, vector<8x32xf32>
    tpu.vector_store %arg9[%c0_48, %c0_49], %174 {strides = array<i32>} : memref<8x32xf32, #tpu.memory_space<vmem>>, vector<8x32xf32>,
    %c0_50 = arith.constant 0 : index
    %c0_51 = arith.constant 0 : index
    %187 = vector.load %arg10[%c0_50, %c0_51] : memref<8x32xf32, #tpu.memory_space<vmem>>, vector<8x32xf32>
    tpu.vector_store %arg10[%c0_50, %c0_51], %177 {strides = array<i32>} : memref<8x32xf32, #tpu.memory_space<vmem>>, vector<8x32xf32>,
    %c1_i32_52 = arith.constant 1 : i32
    %188 = arith.cmpi eq, %arg0, %c1_i32_52 : i32
    %189 = arith.extui %188 : i1 to i32
    %c0_i32_53 = arith.constant 0 : i32
    %190 = arith.cmpi ne, %189, %c0_i32_53 : i32
    scf.if %190 {
      %c0_54 = arith.constant 0 : index
      %c0_55 = arith.constant 0 : index
      %c0_56 = arith.constant 0 : index
      %191 = vector.load %arg7[%c0_54, %c0_55, %c0_56] : memref<1x8x32xf32, #tpu.memory_space<vmem>>, vector<1x8x32xf32>
      %192 = vector.shape_cast %191 : vector<1x8x32xf32> to vector<8x32xf32>
      %193 = vector.shape_cast %174 : vector<8x32xf32> to vector<1x8x32xf32>
      tpu.vector_store %arg7[%c0_54, %c0_55, %c0_56], %193 {strides = array<i32>} : memref<1x8x32xf32, #tpu.memory_space<vmem>>, vector<1x8x32xf32>,
      %c0_57 = arith.constant 0 : index
      %c0_58 = arith.constant 0 : index
      %c0_59 = arith.constant 0 : index
      %194 = vector.load %arg8[%c0_57, %c0_58, %c0_59] : memref<1x8x32xf32, #tpu.memory_space<vmem>>, vector<1x8x32xf32>
      %195 = vector.shape_cast %194 : vector<1x8x32xf32> to vector<8x32xf32>
      %196 = vector.shape_cast %177 : vector<8x32xf32> to vector<1x8x32xf32>
      tpu.vector_store %arg8[%c0_57, %c0_58, %c0_59], %196 {strides = array<i32>} : memref<1x8x32xf32, #tpu.memory_space<vmem>>, vector<1x8x32xf32>,
    } else {
    }
    return
  }
  func.func @transform_0(%arg0: i32) -> (i32, i32, i32) {
    %c0_i32 = arith.constant 0 : i32
    %c0_i32_0 = arith.constant 0 : i32
    %c0_i32_1 = arith.constant 0 : i32
    return %arg0, %c0_i32, %c0_i32_0 : i32, i32, i32
  }
  func.func @transform_1(%arg0: i32) -> (i32, i32) {
    %c0_i32 = arith.constant 0 : i32
    %c0_i32_0 = arith.constant 0 : i32
    %c0_i32_1 = arith.constant 0 : i32
    return %c0_i32, %c0_i32_0 : i32, i32
  }
  func.func @transform_2(%arg0: i32) -> (i32, i32) {
    %c0_i32 = arith.constant 0 : i32
    %c0_i32_0 = arith.constant 0 : i32
    %c0_i32_1 = arith.constant 0 : i32
    return %c0_i32, %c0_i32_0 : i32, i32
  }
  func.func @transform_3(%arg0: i32) -> (i32, i32) {
    %c0_i32 = arith.constant 0 : i32
    %c0_i32_0 = arith.constant 0 : i32
    %c0_i32_1 = arith.constant 0 : i32
    return %c0_i32, %c0_i32_0 : i32, i32
  }
  func.func @transform_4(%arg0: i32) -> (i32, i32) {
    %c0_i32 = arith.constant 0 : i32
    %c0_i32_0 = arith.constant 0 : i32
    %c0_i32_1 = arith.constant 0 : i32
    return %c0_i32, %c0_i32_0 : i32, i32
  }
  func.func @transform_5(%arg0: i32) -> (i32, i32, i32) {
    %c0_i32 = arith.constant 0 : i32
    %c0_i32_0 = arith.constant 0 : i32
    %c0_i32_1 = arith.constant 0 : i32
    return %arg0, %c0_i32, %c0_i32_0 : i32, i32, i32
  }
  func.func @transform_6(%arg0: i32) -> (i32, i32, i32) {
    %c0_i32 = arith.constant 0 : i32
    %c0_i32_0 = arith.constant 0 : i32
    %c0_i32_1 = arith.constant 0 : i32
    %c0_i32_2 = arith.constant 0 : i32
    return %c0_i32, %c0_i32_0, %c0_i32_1 : i32, i32, i32
  }
  func.func @transform_7(%arg0: i32) -> (i32, i32, i32) {
    %c0_i32 = arith.constant 0 : i32
    %c0_i32_0 = arith.constant 0 : i32
    %c0_i32_1 = arith.constant 0 : i32
    %c0_i32_2 = arith.constant 0 : i32
    return %c0_i32, %c0_i32_0, %c0_i32_1 : i32, i32, i32
  }
}

</mosaic_0001>

<llo_original>
// kernel: _lambda_.1
$region0: #{_lambda_.1}
  #allocation0 [shape = 'u32[]', space=smem, size = 0x4, offset = 0x4, fixed_abs, tag = 'smem constant byte address 0x4 - core index']
  #allocation1 [shape = 'u32[144,128]{1,0:T(1,128)}', space=vmem, size = 0x12000, scoped, tag = 'internal scratch']
  #allocation2 [shape = 'f32[8,32]{1,0:T(8,128)}', space=vmem, size = 0x1000, scoped, tag = 'scratch operand']
  #allocation3 [shape = 'f32[8,32]{1,0:T(8,128)}', space=vmem, size = 0x1000, scoped, tag = 'scratch operand']
  #allocation4 [shape = 'f32[4,8,128]{2,1,0:T(8,128)}', space=vmem, size = 0x4000, scoped, tag = 'scratch operand']
  %s0 = inlined_call_operand.vmem [shape: bf16[8,8,8], index: 0, kind: input, shape index: {}]
  %s1 = inlined_call_operand.vmem [shape: s32[8,1], index: 1, kind: input, shape index: {}]
  %s2 = inlined_call_operand.vmem [shape: bf16[8,128], index: 2, kind: input, shape index: {}]
  %s3 = inlined_call_operand.vmem [shape: bf16[32,128], index: 3, kind: input, shape index: {}]
  %s4 = inlined_call_operand.vmem [shape: f32[1,128], index: 4, kind: input, shape index: {}]
  %s5 = inlined_call_operand.vmem [shape: f32[8,8,32], index: 5, kind: output, shape index: {0}]
  %s6 = inlined_call_operand.vmem [shape: f32[1,8,32], index: 6, kind: output, shape index: {1}]
  %s7 = inlined_call_operand.vmem [shape: f32[1,8,32], index: 7, kind: output, shape index: {2}]
  %8 = xla_tuple %s5, %s6, %s7
  %s9 = sld [smem:[#allocation0]]
  $region77: #{_lambda_.1} parent=0
    _
  %s11 = ssub.s32 1, %s9
  %s12 = scalar_select 0, %s11, %s9
  loop: start=0, step=1, limit=4
  $region2: #{_lambda_.1} parent=0 // loop_pre_header
    _
  $region3: #{_lambda_.1} parent=0 // loop_header
    %s14 = sphi 0, %s18
    %p15 = scmp.ge.s32.totalorder %s14, 4
    %s24 = sphi 0, %s26
    %s27 = sphi 0, %s24
    %s28 = sphi 0, %s27
    %s44 = sphi 0, %s28
    %s48 = sphi 0, %s48
    %s50 = sphi 0, %s48
    %s51 = sphi 0, %s50
    %s65 = sphi 0, %s51
    %s69 = sphi 0, %s69
    %s71 = sphi 0, %s69
    %s72 = sphi 0, %s71
    %s86 = sphi 0, %s72
    %s90 = sphi 0, %s90
    %s92 = sphi 0, %s90
    %s93 = sphi 0, %s92
    %s107 = sphi 0, %s93
    %s111 = sphi 0, %s111
    %s113 = sphi 0, %s111
    %s114 = sphi 0, %s113
    %s128 = sphi 0, %s114
    %s134 = sphi 0, %s136
    %s137 = sphi 0, %s134
    %s138 = sphi 0, %s137
    %s154 = sphi 0, %s138
    %s158 = sphi 0, %s158
    %s160 = sphi 0, %s158
    %s161 = sphi 0, %s160
    %s175 = sphi 0, %s161
    %s179 = sphi 0, %s179
    %s181 = sphi 0, %s179
    %s182 = sphi 0, %s181
    %s196 = sphi 0, %s182
  $region4: #{_lambda_.1} parent=0 // loop_header_branch
    %17 = sbr.rel (%p15) target = $region8
  $region5: #{_lambda_.1} parent=0 // loop_body
    %s19 = ssub.s32 %s14, 1
    %s20 = ssub.s32 %s14, 2
    %s21 = sadd.s32 %s14, 1
    %s22 = ssub.s32 %s14, %s21
    %p23 = scmp.eq.s32.totalorder %s22, 0
    %s25 = sadd.s32 %s24, 1
    %s26 = scalar_select %p23, %s24, %s25
    %p29 = pneg %p23
    %p30 = scmp.eq.s32.totalorder %s14, 1
    %p31 = por %p29, %p30
    %p32 = scmp.ne.s32.totalorder %s24, %s27
    %p33 = scmp.eq.s32.totalorder %s14, 0
    %p34 = por %p32, %p33
    %p35 = scmp.ne.s32.totalorder %s24, %s27
    %p36 = scmp.eq.s32.totalorder %s19, 1
    %p37 = por %p35, %p36
    %p38 = scmp.ne.s32.totalorder %s27, %s28
    %p39 = scmp.eq.s32.totalorder %s19, 0
    %p40 = por %p38, %p39
    %p41 = scmp.ne.s32.totalorder %s27, %s28
    %p42 = scmp.eq.s32.totalorder %s20, 1
    %p43 = por %p41, %p42
    %p45 = scmp.ne.s32.totalorder %s28, %s44
    %p46 = scmp.eq.s32.totalorder %s20, 0
    %p47 = por %p45, %p46
    %s49 = sadd.s32 %s48, 1
    %p52 = scmp.eq.s32.totalorder %s14, 1
    %p53 = scmp.ne.s32.totalorder %s48, %s50
    %p54 = scmp.eq.s32.totalorder %s14, 0
    %p55 = por %p53, %p54
    %p56 = scmp.ne.s32.totalorder %s48, %s50
    %p57 = scmp.eq.s32.totalorder %s19, 1
    %p58 = por %p56, %p57
    %p59 = scmp.ne.s32.totalorder %s50, %s51
    %p60 = scmp.eq.s32.totalorder %s19, 0
    %p61 = por %p59, %p60
    %p62 = scmp.ne.s32.totalorder %s50, %s51
    %p63 = scmp.eq.s32.totalorder %s20, 1
    %p64 = por %p62, %p63
    %p66 = scmp.ne.s32.totalorder %s51, %s65
    %p67 = scmp.eq.s32.totalorder %s20, 0
    %p68 = por %p66, %p67
    %s70 = sadd.s32 %s69, 1
    %p73 = scmp.eq.s32.totalorder %s14, 1
    %p74 = scmp.ne.s32.totalorder %s69, %s71
    %p75 = scmp.eq.s32.totalorder %s14, 0
    %p76 = por %p74, %p75
    %p77 = scmp.ne.s32.totalorder %s69, %s71
    %p78 = scmp.eq.s32.totalorder %s19, 1
    %p79 = por %p77, %p78
    %p80 = scmp.ne.s32.totalorder %s71, %s72
    %p81 = scmp.eq.s32.totalorder %s19, 0
    %p82 = por %p80, %p81
    %p83 = scmp.ne.s32.totalorder %s71, %s72
    %p84 = scmp.eq.s32.totalorder %s20, 1
    %p85 = por %p83, %p84
    %p87 = scmp.ne.s32.totalorder %s72, %s86
    %p88 = scmp.eq.s32.totalorder %s20, 0
    %p89 = por %p87, %p88
    %s91 = sadd.s32 %s90, 1
    %p94 = scmp.eq.s32.totalorder %s14, 1
    %p95 = scmp.ne.s32.totalorder %s90, %s92
    %p96 = scmp.eq.s32.totalorder %s14, 0
    %p97 = por %p95, %p96
    %p98 = scmp.ne.s32.totalorder %s90, %s92
    %p99 = scmp.eq.s32.totalorder %s19, 1
    %p100 = por %p98, %p99
    %p101 = scmp.ne.s32.totalorder %s92, %s93
    %p102 = scmp.eq.s32.totalorder %s19, 0
    %p103 = por %p101, %p102
    %p104 = scmp.ne.s32.totalorder %s92, %s93
    %p105 = scmp.eq.s32.totalorder %s20, 1
    %p106 = por %p104, %p105
    %p108 = scmp.ne.s32.totalorder %s93, %s107
    %p109 = scmp.eq.s32.totalorder %s20, 0
    %p110 = por %p108, %p109
    %s112 = sadd.s32 %s111, 1
    %p115 = scmp.eq.s32.totalorder %s14, 1
    %p116 = scmp.ne.s32.totalorder %s111, %s113
    %p117 = scmp.eq.s32.totalorder %s14, 0
    %p118 = por %p116, %p117
    %p119 = scmp.ne.s32.totalorder %s111, %s113
    %p120 = scmp.eq.s32.totalorder %s19, 1
    %p121 = por %p119, %p120
    %p122 = scmp.ne.s32.totalorder %s113, %s114
    %p123 = scmp.eq.s32.totalorder %s19, 0
    %p124 = por %p122, %p123
    %p125 = scmp.ne.s32.totalorder %s113, %s114
    %p126 = scmp.eq.s32.totalorder %s20, 1
    %p127 = por %p125, %p126
    %p129 = scmp.ne.s32.totalorder %s114, %s128
    %p130 = scmp.eq.s32.totalorder %s20, 0
    %p131 = por %p129, %p130
    %s132 = ssub.s32 %s14, %s21
    %p133 = scmp.eq.s32.totalorder %s132, 0
    %s135 = sadd.s32 %s134, 1
    %s136 = scalar_select %p133, %s134, %s135
    %p139 = pneg %p133
    %p140 = scmp.eq.s32.totalorder %s14, 1
    %p141 = por %p139, %p140
    %p142 = scmp.ne.s32.totalorder %s134, %s137
    %p143 = scmp.eq.s32.totalorder %s14, 0
    %p144 = por %p142, %p143
    %p145 = scmp.ne.s32.totalorder %s134, %s137
    %p146 = scmp.eq.s32.totalorder %s19, 1
    %p147 = por %p145, %p146
    %p148 = scmp.ne.s32.totalorder %s137, %s138
    %p149 = scmp.eq.s32.totalorder %s19, 0
    %p150 = por %p148, %p149
    %p151 = scmp.ne.s32.totalorder %s137, %s138
    %p152 = scmp.eq.s32.totalorder %s20, 1
    %p153 = por %p151, %p152
    %p155 = scmp.ne.s32.totalorder %s138, %s154
    %p156 = scmp.eq.s32.totalorder %s20, 0
    %p157 = por %p155, %p156
    %s159 = sadd.s32 %s158, 1
    %p162 = scmp.eq.s32.totalorder %s14, 1
    %p163 = scmp.ne.s32.totalorder %s158, %s160
    %p164 = scmp.eq.s32.totalorder %s14, 0
    %p165 = por %p163, %p164
    %p166 = scmp.ne.s32.totalorder %s158, %s160
    %p167 = scmp.eq.s32.totalorder %s19, 1
    %p168 = por %p166, %p167
    %p169 = scmp.ne.s32.totalorder %s160, %s161
    %p170 = scmp.eq.s32.totalorder %s19, 0
    %p171 = por %p169, %p170
    %p172 = scmp.ne.s32.totalorder %s160, %s161
    %p173 = scmp.eq.s32.totalorder %s20, 1
    %p174 = por %p172, %p173
    %p176 = scmp.ne.s32.totalorder %s161, %s175
    %p177 = scmp.eq.s32.totalorder %s20, 0
    %p178 = por %p176, %p177
    %s180 = sadd.s32 %s179, 1
    %p183 = scmp.eq.s32.totalorder %s14, 1
    %p184 = scmp.ne.s32.totalorder %s179, %s181
    %p185 = scmp.eq.s32.totalorder %s14, 0
    %p186 = por %p184, %p185
    %p187 = scmp.ne.s32.totalorder %s179, %s181
    %p188 = scmp.eq.s32.totalorder %s19, 1
    %p189 = por %p187, %p188
    %p190 = scmp.ne.s32.totalorder %s181, %s182
    %p191 = scmp.eq.s32.totalorder %s19, 0
    %p192 = por %p190, %p191
    %p193 = scmp.ne.s32.totalorder %s181, %s182
    %p194 = scmp.eq.s32.totalorder %s20, 1
    %p195 = por %p193, %p194
    %p197 = scmp.ne.s32.totalorder %s182, %s196
    %p198 = scmp.eq.s32.totalorder %s20, 0
    %p199 = por %p197, %p198
    %p200 = scmp.le.s32.totalorder 1, %s14
    %p201 = scmp.lt.s32.totalorder %s14, 3
    %p202 = pnand %p200, %p201
    %p203 = pneg %p202
    // Predicated region
    $region9: #{_lambda_.1} parent=5 // pred_check
      _
    $region10: #{_lambda_.1} parent=5 // pred_check_branch
      %205 = sbr.rel (%p202) target = $region12
    $region11: #{_lambda_.1} parent=5 // pred_region
      %s206 = ssub.s32 %s14, 1
      // Predicated region
      $region13: #{_lambda_.1} parent=11 // pred_check
        %p207 = pneg %p61
      $region14: #{_lambda_.1} parent=11 // pred_check_branch
        %209 = sbr.rel (%p207) target = $region16
      $region15: #{_lambda_.1} parent=11 // pred_region
        _
      $region16: #{_lambda_.1} parent=11 // pred_fallthru
        _
      // Predicated region
      $region17: #{_lambda_.1} parent=11 // pred_check
        %p210 = pneg %p82
      $region18: #{_lambda_.1} parent=11 // pred_check_branch
        %212 = sbr.rel (%p210) target = $region20
      $region19: #{_lambda_.1} parent=11 // pred_region
        _
      $region20: #{_lambda_.1} parent=11 // pred_fallthru
        _
      // Predicated region
      $region21: #{_lambda_.1} parent=11 // pred_check
        %p213 = pneg %p103
      $region22: #{_lambda_.1} parent=11 // pred_check_branch
        %215 = sbr.rel (%p213) target = $region24
      $region23: #{_lambda_.1} parent=11 // pred_region
        _
      $region24: #{_lambda_.1} parent=11 // pred_fallthru
        _
      // Predicated region
      $region25: #{_lambda_.1} parent=11 // pred_check
        %p216 = pneg %p124
      $region26: #{_lambda_.1} parent=11 // pred_check_branch
        %218 = sbr.rel (%p216) target = $region28
      $region27: #{_lambda_.1} parent=11 // pred_region
        _
      $region28: #{_lambda_.1} parent=11 // pred_fallthru
        _
    $region12: #{_lambda_.1} parent=5 // pred_fallthru
      _
    %p219 = scmp.lt.s32.totalorder %s14, 2
    // Predicated region
    $region29: #{_lambda_.1} parent=5 // pred_check
      %p220 = pneg %p219
    $region30: #{_lambda_.1} parent=5 // pred_check_branch
      %222 = sbr.rel (%p220) target = $region32
    $region31: #{_lambda_.1} parent=5 // pred_region
      // Predicated region
      $region33: #{_lambda_.1} parent=31 // pred_check
        %p223 = pneg %p34
      $region34: #{_lambda_.1} parent=31 // pred_check_branch
        %225 = sbr.rel (%p223) target = $region36
      $region35: #{_lambda_.1} parent=31 // pred_region
        %s226 = smul.u32 4, %s14
        %p227 = scmp.lt.s32.totalorder %s226, 7
        %s228 = scalar_select %p227, %s226, 7
        %s229 = smul.addr %s228, 4
        %s230 = scalar_lea.vmem %s0, %s229
        %s231 = smul.u32 4, %s14
      $region36: #{_lambda_.1} parent=31 // pred_fallthru
        _
    $region32: #{_lambda_.1} parent=5 // pred_fallthru
      _
    %p232 = scmp.le.s32.totalorder 1, %s14
    %p233 = scmp.lt.s32.totalorder %s14, 3
    %p234 = pnand %p232, %p233
    %p235 = pneg %p234
    // Predicated region
    $region37: #{_lambda_.1} parent=5 // pred_check
      _
    $region38: #{_lambda_.1} parent=5 // pred_check_branch
      %237 = sbr.rel (%p234) target = $region40
    $region39: #{_lambda_.1} parent=5 // pred_region
      %s238 = ssub.s32 %s14, 1
      %s239 = smul.u32 4, %s19
      %p240 = scmp.lt.s32.totalorder %s239, 7
      %s241 = scalar_select %p240, %s239, 7
      %s242 = smul.addr %s241, 4
      %s243 = scalar_lea.vmem %s0, %s242
      %p244 = pneg %p40
      %p245 = pneg %p37
      %p246 = pneg %p61
      %p247 = pneg %p58
      %p248 = pneg %p82
      %p249 = pneg %p79
      %p250 = pneg %p103
      %p251 = pneg %p100
      %p252 = pneg %p124
      %p253 = pneg %p121
      %p254 = pneg %p150
      %p255 = pneg %p147
      %s256 = smul.u32 4, %s19
      %p257 = scmp.lt.s32.totalorder %s256, 7
      %s258 = scalar_select %p257, %s256, 7
      %s259 = smul.addr %s258, 8
      %s260 = scalar_lea.vmem %s5, %s259
      %p261 = pneg %p171
      %p262 = pneg %p168
      %p263 = pneg %p192
      %p264 = pneg %p189
      %s265 = smul.u32 4, %s19
      %p266 = scmp.lt.s32.totalorder %s265, 7
      %s267 = scalar_select %p266, %s265, 7
      %s268 = smul.addr %s267, 4
      %s269 = scalar_lea.vmem %s0, %s268
      %s270 = smul.u32 4, %s19
      %s271 = smul.u32 4, %s19
      %p272 = scmp.lt.s32.totalorder %s271, 7
      %s273 = scalar_select %p272, %s271, 7
      %s274 = smul.addr %s273, 8
      %s275 = scalar_lea.vmem %s5, %s274
      %s276 = smul.u32 4, %s19
      %p278 = scmp.eq.s32.totalorder %s19, 0
      // Predicated region
      $region41: #{_lambda_.1} parent=39 // pred_check
        %p279 = pneg %p278
      $region42: #{_lambda_.1} parent=39 // pred_check_branch
        %281 = sbr.rel (%p279) target = $region44
      $region43: #{_lambda_.1} parent=39 // pred_region
        %vm282 = vcmask 261120
        %283 = vst.msk [vmem:[#allocation2] sm:$0xff] %vm282, 0.0
        %284 = vst.msk [vmem:[#allocation3] sm:$0xff] %vm282, 0.0
      $region44: #{_lambda_.1} parent=39 // pred_fallthru
        _
      %v285 = vld [vmem:[%s269] sm:$0xf]
      %v286 = vld [vmem:[%s269 + $0x4] sm:$0xf]
      %v287 = vld [vmem:[%s269 + $0x8] sm:$0xf]
      %v288 = vld [vmem:[%s269 + $0xc] sm:$0xf]
      %v289 = vld [vmem:[%s2] sm:$0xf]
      %v294 = vunpack.c.l.b16 %v285
      %v295 = vunpack.c.l.b16 %v286
      %v296 = vunpack.c.l.b16 %v287
      %v297 = vunpack.c.l.b16 %v288
      %v298 = vpack.c.b16 %v295, %v294
      %v299 = vpack.c.b16 %v297, %v296
      %vm300 = vcmask 64512
      %v302 = vsel %vm300, %v298, 0
      %v305 = vsel %vm300, %v299, 0
      %vm307 = vcmask 1043456
      %v309 = vsel %vm307, %v289, 0
      %311 = vmatprep.subr.bf16.mxu0 0
      %312 = vmatpush1.bf16.msra.mxu0 0
      %313 = vmatprep.subr.bf16.mxu0 0
      %314 = vmatpush1.bf16.msra.mxu0 0
      %315 = vmatprep.subr.bf16.mxu0 0
      %316 = vmatpush1.bf16.msra.mxu0 0
      %317 = vmatprep.subr.bf16.mxu0 0
      %318 = vmatpush1.bf16.msra.mxu0 0
      %319 = vmatprep.subr.bf16.mxu0 0
      %320 = vmatpush1.bf16.msra.mxu0 0
      %321 = vmatprep.subr.bf16.mxu0 0
      %322 = vmatpush1.bf16.msra.mxu0 0
      %323 = vmatprep.subr.bf16.mxu0 0
      %324 = vmatpush1.bf16.msra.mxu0 0
      %325 = vmatprep.subr.bf16.mxu0 0
      %326 = vmatpush1.bf16.msra.mxu0 %v309
      %327 = vmatprep.subr.bf16.mxu0 0
      %328 = vmatpush2.bf16.msra.mxu0 0
      %329 = vmatprep.subr.bf16.mxu0 0
      %330 = vmatpush2.bf16.msra.mxu0 0
      %331 = vmatprep.subr.bf16.mxu0 0
      %332 = vmatpush2.bf16.msra.mxu0 0
      %333 = vmatprep.subr.bf16.mxu0 0
      %334 = vmatpush2.bf16.msra.mxu0 0
      %335 = vmatprep.subr.bf16.mxu0 0
      %336 = vmatpush2.bf16.msra.mxu0 0
      %337 = vmatprep.subr.bf16.mxu0 0
      %338 = vmatpush2.bf16.msra.mxu0 0
      %339 = vmatprep.subr.bf16.mxu0 0
      %340 = vmatpush2.bf16.msra.mxu0 0
      %341 = vmatprep.subr.bf16.mxu0 0
      %342 = vmatpush2.bf16.msra.mxu0 0
      %343 = vmatprep.mubr.bf16.mxu0 0
      %344 = vmatmul.mubr.bf16.gmra.mxu0 %v302
      %v345 = vpop.f32.mrf.mxu0
      %v346 = vadd.f32 0.0, %v345
      %v347 = vpop.f32.mrf.mxu0
      %v348 = vpop.f32.mrf.mxu0
      %v349 = vadd.f32 0.0, %v348
      %v350 = vpop.f32.mrf.mxu0
      %351 = vmatprep.mubr.bf16.mxu0 0
      %352 = vmatmul.mubr.bf16.gmra.mxu0 %v305
      %v353 = vpop.f32.mrf.mxu0
      %v354 = vadd.f32 0.0, %v353
      %v355 = vpop.f32.mrf.mxu0
      %v356 = vpop.f32.mrf.mxu0
      %v357 = vadd.f32 0.0, %v356
      %v358 = vpop.f32.mrf.mxu0
      %359 = vdwg.mxu0
      %v360 = vld [vmem:[%s4] sm:$0x1]
      %v362 = vlaneseq
      %v363 = vshrl.u32 %v362, 7
      %v364 = vsub.s32 0, %v363
      %v365 = vrot.slane %v360, %v364
      %v367 = vadd.f32 %v346, %v365
      %v368 = vadd.f32 %v349, %v365
      %v369 = vadd.f32 %v354, %v365
      %v370 = vadd.f32 %v357, %v365
      %371 = vst [vmem:[#allocation4] sm:$0xff] %v367
      %372 = vst [vmem:[#allocation4 + $0x8] sm:$0xff] %v368
      %373 = vst [vmem:[#allocation4 + $0x10] sm:$0xff] %v369
      %374 = vst [vmem:[#allocation4 + $0x18] sm:$0xff] %v370
      %v375 = vld [vmem:[%s1] sm:$0xff]
      %v376 = vld [vmem:[%s3] sm:$0xf]
      %v377 = vld [vmem:[%s3 + $0x4] sm:$0xf]
      %v378 = vld [vmem:[%s3 + $0x8] sm:$0xf]
      %v379 = vld [vmem:[%s3 + $0xc] sm:$0xf]
      %v380 = vlaneseq
      %v381 = vand.u32 %v380, 127
      %vm382 = vcmp.ge.s32.totalorder %v381, 64
      %vm383 = vcmp.lt.s32.totalorder %v381, 96
      %vm384 = vmand %vm382, %vm383
      %v385 = vsel %vm384, 1.0, 0.5
      %v386 = vsel %vm384, 0.0, 0.5
      %s387 = smul.u32 %s19, 4
      %v388 = vld [vmem:[#allocation2] sm:$0xff]
      %v389 = vld [vmem:[#allocation3] sm:$0xff]
      %v390 = vld [vmem:[#allocation4] sm:$0xff]
      %v391 = vpack.c.bf16 %v388, %v388
      %v396 = vunpack.c.l.b16 %v376
      %v397 = vunpack.c.l.b16 %v377
      %v398 = vunpack.c.l.b16 %v378
      %v399 = vunpack.c.l.b16 %v379
      %v400 = vpack.c.b16 %v397, %v396
      %v401 = vpack.c.b16 %v399, %v398
      %vm404 = vcmask 261120
      %v406 = vsel %vm404, %v391, 0
      %408 = vmatprep.subr.bf16.mxu0 0
      %409 = vmatpush1.bf16.msra.mxu0 0
      %410 = vmatprep.subr.bf16.mxu0 0
      %411 = vmatpush1.bf16.msra.mxu0 0
      %412 = vmatprep.subr.bf16.mxu0 0
      %413 = vmatpush1.bf16.msra.mxu0 0
      %414 = vmatprep.subr.bf16.mxu0 0
      %415 = vmatpush1.bf16.msra.mxu0 0
      %416 = vmatprep.subr.bf16.mxu0 0
      %417 = vmatpush1.bf16.msra.mxu0 0
      %418 = vmatprep.subr.bf16.mxu0 0
      %419 = vmatpush1.bf16.msra.mxu0 0
      %420 = vmatprep.subr.bf16.mxu0 0
      %421 = vmatpush1.bf16.msra.mxu0 %v401
      %422 = vmatprep.subr.bf16.mxu0 0
      %423 = vmatpush1.bf16.msra.mxu0 %v400
      %424 = vmatprep.subr.bf16.mxu0 0
      %425 = vmatpush2.bf16.msra.mxu0 0
      %426 = vmatprep.subr.bf16.mxu0 0
      %427 = vmatpush2.bf16.msra.mxu0 0
      %428 = vmatprep.subr.bf16.mxu0 0
      %429 = vmatpush2.bf16.msra.mxu0 0
      %430 = vmatprep.subr.bf16.mxu0 0
      %431 = vmatpush2.bf16.msra.mxu0 0
      %432 = vmatprep.subr.bf16.mxu0 0
      %433 = vmatpush2.bf16.msra.mxu0 0
      %434 = vmatprep.subr.bf16.mxu0 0
      %435 = vmatpush2.bf16.msra.mxu0 0
      %436 = vmatprep.subr.bf16.mxu0 0
      %437 = vmatpush2.bf16.msra.mxu0 0
      %438 = vmatprep.subr.bf16.mxu0 0
      %439 = vmatpush2.bf16.msra.mxu0 0
      %440 = vmatprep.mubr.bf16.mxu0 0
      %441 = vmatmul.mubr.bf16.gmra.mxu0 %v406
      %v442 = vpop.f32.mrf.mxu0
      %v443 = vadd.f32 0.0, %v442
      %v444 = vpop.f32.mrf.mxu0
      %v445 = vpop.f32.mrf.mxu0
      %v446 = vpop.f32.mrf.mxu0
      %447 = vdwg.mxu0
      %v448 = vadd.f32 %v390, %v443
      %v449 = vmul.f32 %v448, %v385
      %v450 = vtanh.pop %v449
      %v451 = vmul.f32 %v450, %v385
      %v452 = vadd.f32 %v451, %v386
      %454 = vrot.lane.b32.xlu0 %v389, 32
      %v455 = vpop.permute.xlu0 %454
      %v457 = vmul.f32 %v452, %v455
      %459 = vrot.lane.b32.xlu0 %v452, 64
      %v460 = vpop.permute.xlu0 %459
      %v462 = vmul.f32 %v452, %v460
      %464 = vrot.lane.b32.xlu0 %v462, 32
      %v465 = vpop.permute.xlu0 %464
      %v467 = vadd.f32 %v457, %v465
      %v468 = vtanh.pop %v467
      %470 = vrot.lane.b32.xlu0 %v468, 64
      %v471 = vpop.permute.xlu0 %470
      %v473 = vmul.f32 %v452, %v471
      %v474 = vstv %s387
      %vm475 = vcmp.lt.s32.totalorder %v474, %v375
      %v476 = vsel %vm475, 1, 0
      %477 = vset.pattern.permute.xlu0 0
      %478 = vperm.xlu0 %477, %v476
      %v479 = vpop.permute.xlu0 %478
      %vm480 = vcmp.eq.s32.totalorder %v479, 1
      %482 = vrot.lane.b32.xlu0 %v388, 96
      %v483 = vpop.permute.xlu0 %482
      %v485 = vsel %vm480, %v473, %v483
      %v486 = vsel %vm480, %v467, %v455
      %v487 = vsel %vm480, %v473, 0.0
      %489 = vrot.lane.b32.xlu0 %v487, 32
      %v490 = vpop.permute.xlu0 %489
      %492 = vst.msk [vmem:[%s275] sm:$0xff] %vm404, %v490
      %s493 = scalar_lea.vmem [#allocation4], 8
      %v494 = vld [vmem:[%s493] sm:$0xff]
      %v495 = vpack.c.bf16 %v485, %v485
      %497 = vrot.lane.b32.xlu0 %v495, 32
      %v498 = vpop.permute.xlu0 %497
      %v500 = vsel %vm404, %v498, 0
      %502 = vmatprep.subr.bf16.mxu0 0
      %503 = vmatpush1.bf16.msra.mxu0 0
      %504 = vmatprep.subr.bf16.mxu0 0
      %505 = vmatpush1.bf16.msra.mxu0 0
      %506 = vmatprep.subr.bf16.mxu0 0
      %507 = vmatpush1.bf16.msra.mxu0 0
      %508 = vmatprep.subr.bf16.mxu0 0
      %509 = vmatpush1.bf16.msra.mxu0 0
      %510 = vmatprep.subr.bf16.mxu0 0
      %511 = vmatpush1.bf16.msra.mxu0 0
      %512 = vmatprep.subr.bf16.mxu0 0
      %513 = vmatpush1.bf16.msra.mxu0 0
      %514 = vmatprep.subr.bf16.mxu0 0
      %515 = vmatpush1.bf16.msra.mxu0 %v401
      %516 = vmatprep.subr.bf16.mxu0 0
      %517 = vmatpush1.bf16.msra.mxu0 %v400
      %518 = vmatprep.subr.bf16.mxu0 0
      %519 = vmatpush2.bf16.msra.mxu0 0
      %520 = vmatprep.subr.bf16.mxu0 0
      %521 = vmatpush2.bf16.msra.mxu0 0
      %522 = vmatprep.subr.bf16.mxu0 0
      %523 = vmatpush2.bf16.msra.mxu0 0
      %524 = vmatprep.subr.bf16.mxu0 0
      %525 = vmatpush2.bf16.msra.mxu0 0
      %526 = vmatprep.subr.bf16.mxu0 0
      %527 = vmatpush2.bf16.msra.mxu0 0
      %528 = vmatprep.subr.bf16.mxu0 0
      %529 = vmatpush2.bf16.msra.mxu0 0
      %530 = vmatprep.subr.bf16.mxu0 0
      %531 = vmatpush2.bf16.msra.mxu0 0
      %532 = vmatprep.subr.bf16.mxu0 0
      %533 = vmatpush2.bf16.msra.mxu0 0
      %534 = vmatprep.mubr.bf16.mxu0 0
      %535 = vmatmul.mubr.bf16.gmra.mxu0 %v500
      %v536 = vpop.f32.mrf.mxu0
      %v537 = vadd.f32 0.0, %v536
      %v538 = vpop.f32.mrf.mxu0
      %v539 = vpop.f32.mrf.mxu0
      %v540 = vpop.f32.mrf.mxu0
      %541 = vdwg.mxu0
      %v542 = vadd.f32 %v494, %v537
      %v543 = vmul.f32 %v542, %v385
      %v544 = vtanh.pop %v543
      %v545 = vmul.f32 %v544, %v385
      %v546 = vadd.f32 %v545, %v386
      %v547 = vmul.f32 %v546, %v486
      %549 = vrot.lane.b32.xlu0 %v546, 64
      %v550 = vpop.permute.xlu0 %549
      %v552 = vmul.f32 %v546, %v550
      %554 = vrot.lane.b32.xlu0 %v552, 32
      %v555 = vpop.permute.xlu0 %554
      %v557 = vadd.f32 %v547, %v555
      %v558 = vtanh.pop %v557
      %560 = vrot.lane.b32.xlu0 %v558, 64
      %v561 = vpop.permute.xlu0 %560
      %v563 = vmul.f32 %v546, %v561
      %s564 = sadd.s32 %s387, 1
      %v565 = vstv %s564
      %vm566 = vcmp.lt.s32.totalorder %v565, %v375
      %v567 = vsel %vm566, 1, 0
      %568 = vset.pattern.permute.xlu0 0
      %569 = vperm.xlu0 %568, %v567
      %v570 = vpop.permute.xlu0 %569
      %vm571 = vcmp.eq.s32.totalorder %v570, 1
      %v572 = vsel %vm571, %v563, %v485
      %v573 = vsel %vm571, %v557, %v486
      %v574 = vsel %vm571, %v563, 0.0
      %576 = vrot.lane.b32.xlu0 %v574, 32
      %v577 = vpop.permute.xlu0 %576
      %s579 = scalar_lea.vmem %s275, 8
      %580 = vst.msk [vmem:[%s579] sm:$0xff] %vm404, %v577
      %s581 = scalar_lea.vmem [#allocation4], 16
      %v582 = vld [vmem:[%s581] sm:$0xff]
      %v583 = vpack.c.bf16 %v572, %v572
      %585 = vrot.lane.b32.xlu0 %v583, 32
      %v586 = vpop.permute.xlu0 %585
      %v588 = vsel %vm404, %v586, 0
      %590 = vmatprep.subr.bf16.mxu0 0
      %591 = vmatpush1.bf16.msra.mxu0 0
      %592 = vmatprep.subr.bf16.mxu0 0
      %593 = vmatpush1.bf16.msra.mxu0 0
      %594 = vmatprep.subr.bf16.mxu0 0
      %595 = vmatpush1.bf16.msra.mxu0 0
      %596 = vmatprep.subr.bf16.mxu0 0
      %597 = vmatpush1.bf16.msra.mxu0 0
      %598 = vmatprep.subr.bf16.mxu0 0
      %599 = vmatpush1.bf16.msra.mxu0 0
      %600 = vmatprep.subr.bf16.mxu0 0
      %601 = vmatpush1.bf16.msra.mxu0 0
      %602 = vmatprep.subr.bf16.mxu0 0
      %603 = vmatpush1.bf16.msra.mxu0 %v401
      %604 = vmatprep.subr.bf16.mxu0 0
      %605 = vmatpush1.bf16.msra.mxu0 %v400
      %606 = vmatprep.subr.bf16.mxu0 0
      %607 = vmatpush2.bf16.msra.mxu0 0
      %608 = vmatprep.subr.bf16.mxu0 0
      %609 = vmatpush2.bf16.msra.mxu0 0
      %610 = vmatprep.subr.bf16.mxu0 0
      %611 = vmatpush2.bf16.msra.mxu0 0
      %612 = vmatprep.subr.bf16.mxu0 0
      %613 = vmatpush2.bf16.msra.mxu0 0
      %614 = vmatprep.subr.bf16.mxu0 0
      %615 = vmatpush2.bf16.msra.mxu0 0
      %616 = vmatprep.subr.bf16.mxu0 0
      %617 = vmatpush2.bf16.msra.mxu0 0
      %618 = vmatprep.subr.bf16.mxu0 0
      %619 = vmatpush2.bf16.msra.mxu0 0
      %620 = vmatprep.subr.bf16.mxu0 0
      %621 = vmatpush2.bf16.msra.mxu0 0
      %622 = vmatprep.mubr.bf16.mxu0 0
      %623 = vmatmul.mubr.bf16.gmra.mxu0 %v588
      %v624 = vpop.f32.mrf.mxu0
      %v625 = vadd.f32 0.0, %v624
      %v626 = vpop.f32.mrf.mxu0
      %v627 = vpop.f32.mrf.mxu0
      %v628 = vpop.f32.mrf.mxu0
      %629 = vdwg.mxu0
      %v630 = vadd.f32 %v582, %v625
      %v631 = vmul.f32 %v630, %v385
      %v632 = vtanh.pop %v631
      %v633 = vmul.f32 %v632, %v385
      %v634 = vadd.f32 %v633, %v386
      %v635 = vmul.f32 %v634, %v573
      %637 = vrot.lane.b32.xlu0 %v634, 64
      %v638 = vpop.permute.xlu0 %637
      %v640 = vmul.f32 %v634, %v638
      %642 = vrot.lane.b32.xlu0 %v640, 32
      %v643 = vpop.permute.xlu0 %642
      %v645 = vadd.f32 %v635, %v643
      %v646 = vtanh.pop %v645
      %648 = vrot.lane.b32.xlu0 %v646, 64
      %v649 = vpop.permute.xlu0 %648
      %v651 = vmul.f32 %v634, %v649
      %s652 = sadd.s32 %s387, 2
      %v653 = vstv %s652
      %vm654 = vcmp.lt.s32.totalorder %v653, %v375
      %v655 = vsel %vm654, 1, 0
      %656 = vset.pattern.permute.xlu0 0
      %657 = vperm.xlu0 %656, %v655
      %v658 = vpop.permute.xlu0 %657
      %vm659 = vcmp.eq.s32.totalorder %v658, 1
      %v660 = vsel %vm659, %v651, %v572
      %v661 = vsel %vm659, %v645, %v573
      %v662 = vsel %vm659, %v651, 0.0
      %664 = vrot.lane.b32.xlu0 %v662, 32
      %v665 = vpop.permute.xlu0 %664
      %s667 = scalar_lea.vmem %s275, 16
      %668 = vst.msk [vmem:[%s667] sm:$0xff] %vm404, %v665
      %s669 = scalar_lea.vmem [#allocation4], 24
      %v670 = vld [vmem:[%s669] sm:$0xff]
      %v671 = vpack.c.bf16 %v660, %v660
      %673 = vrot.lane.b32.xlu0 %v671, 32
      %v674 = vpop.permute.xlu0 %673
      %v676 = vsel %vm404, %v674, 0
      %678 = vmatprep.subr.bf16.mxu0 0
      %679 = vmatpush1.bf16.msra.mxu0 0
      %680 = vmatprep.subr.bf16.mxu0 0
      %681 = vmatpush1.bf16.msra.mxu0 0
      %682 = vmatprep.subr.bf16.mxu0 0
      %683 = vmatpush1.bf16.msra.mxu0 0
      %684 = vmatprep.subr.bf16.mxu0 0
      %685 = vmatpush1.bf16.msra.mxu0 0
      %686 = vmatprep.subr.bf16.mxu0 0
      %687 = vmatpush1.bf16.msra.mxu0 0
      %688 = vmatprep.subr.bf16.mxu0 0
      %689 = vmatpush1.bf16.msra.mxu0 0
      %690 = vmatprep.subr.bf16.mxu0 0
      %691 = vmatpush1.bf16.msra.mxu0 %v401
      %692 = vmatprep.subr.bf16.mxu0 0
      %693 = vmatpush1.bf16.msra.mxu0 %v400
      %694 = vmatprep.subr.bf16.mxu0 0
      %695 = vmatpush2.bf16.msra.mxu0 0
      %696 = vmatprep.subr.bf16.mxu0 0
      %697 = vmatpush2.bf16.msra.mxu0 0
      %698 = vmatprep.subr.bf16.mxu0 0
      %699 = vmatpush2.bf16.msra.mxu0 0
      %700 = vmatprep.subr.bf16.mxu0 0
      %701 = vmatpush2.bf16.msra.mxu0 0
      %702 = vmatprep.subr.bf16.mxu0 0
      %703 = vmatpush2.bf16.msra.mxu0 0
      %704 = vmatprep.subr.bf16.mxu0 0
      %705 = vmatpush2.bf16.msra.mxu0 0
      %706 = vmatprep.subr.bf16.mxu0 0
      %707 = vmatpush2.bf16.msra.mxu0 0
      %708 = vmatprep.subr.bf16.mxu0 0
      %709 = vmatpush2.bf16.msra.mxu0 0
      %710 = vmatprep.mubr.bf16.mxu0 0
      %711 = vmatmul.mubr.bf16.gmra.mxu0 %v676
      %v712 = vpop.f32.mrf.mxu0
      %v713 = vadd.f32 0.0, %v712
      %v714 = vpop.f32.mrf.mxu0
      %v715 = vpop.f32.mrf.mxu0
      %v716 = vpop.f32.mrf.mxu0
      %717 = vdwg.mxu0
      %v718 = vadd.f32 %v670, %v713
      %v719 = vmul.f32 %v718, %v385
      %v720 = vtanh.pop %v719
      %v721 = vmul.f32 %v720, %v385
      %v722 = vadd.f32 %v721, %v386
      %v723 = vmul.f32 %v722, %v661
      %725 = vrot.lane.b32.xlu0 %v722, 64
      %v726 = vpop.permute.xlu0 %725
      %v728 = vmul.f32 %v722, %v726
      %730 = vrot.lane.b32.xlu0 %v728, 32
      %v731 = vpop.permute.xlu0 %730
      %v733 = vadd.f32 %v723, %v731
      %v734 = vtanh.pop %v733
      %736 = vrot.lane.b32.xlu0 %v734, 64
      %v737 = vpop.permute.xlu0 %736
      %v739 = vmul.f32 %v722, %v737
      %s740 = sadd.s32 %s387, 3
      %v741 = vstv %s740
      %vm742 = vcmp.lt.s32.totalorder %v741, %v375
      %v743 = vsel %vm742, 1, 0
      %744 = vset.pattern.permute.xlu0 0
      %745 = vperm.xlu0 %744, %v743
      %v746 = vpop.permute.xlu0 %745
      %vm747 = vcmp.eq.s32.totalorder %v746, 1
      %v748 = vsel %vm747, %v739, %v660
      %v749 = vsel %vm747, %v733, %v661
      %v750 = vsel %vm747, %v739, 0.0
      %752 = vrot.lane.b32.xlu0 %v750, 32
      %v753 = vpop.permute.xlu0 %752
      %s755 = scalar_lea.vmem %s275, 24
      %756 = vst.msk [vmem:[%s755] sm:$0xff] %vm404, %v753
      %758 = vrot.lane.b32.xlu0 %v748, 32
      %v759 = vpop.permute.xlu0 %758
      %761 = vst.msk [vmem:[#allocation2] sm:$0xff] %vm404, %v759
      %763 = vrot.lane.b32.xlu0 %v749, 96
      %v764 = vpop.permute.xlu0 %763
      %766 = vst.msk [vmem:[#allocation3] sm:$0xff] %vm404, %v764
      %p767 = scmp.eq.s32.totalorder %s19, 1
      // Predicated region
      $region45: #{_lambda_.1} parent=39 // pred_check
        %p768 = pneg %p767
      $region46: #{_lambda_.1} parent=39 // pred_check_branch
        %770 = sbr.rel (%p768) target = $region48
      $region47: #{_lambda_.1} parent=39 // pred_region
        %771 = vst.msk [vmem:[%s6] sm:$0xff] %vm404, %v759
        %772 = vst.msk [vmem:[%s7] sm:$0xff] %vm404, %v764
      $region48: #{_lambda_.1} parent=39 // pred_fallthru
        _
      %s773 = smul.u32 4, %s19
      %p774 = scmp.lt.s32.totalorder %s773, 7
      %s775 = scalar_select %p774, %s773, 7
      %s776 = smul.addr %s775, 8
      %s777 = scalar_lea.vmem %s5, %s776
      // Predicated region
      $region49: #{_lambda_.1} parent=39 // pred_check
        %p778 = pneg %p147
      $region50: #{_lambda_.1} parent=39 // pred_check_branch
        %780 = sbr.rel (%p778) target = $region52
      $region51: #{_lambda_.1} parent=39 // pred_region
        %s781 = smul.u32 4, %s19
      $region52: #{_lambda_.1} parent=39 // pred_fallthru
        _
      // Predicated region
      $region53: #{_lambda_.1} parent=39 // pred_check
        %p782 = pneg %p168
      $region54: #{_lambda_.1} parent=39 // pred_check_branch
        %784 = sbr.rel (%p782) target = $region56
      $region55: #{_lambda_.1} parent=39 // pred_region
        _
      $region56: #{_lambda_.1} parent=39 // pred_fallthru
        _
      // Predicated region
      $region57: #{_lambda_.1} parent=39 // pred_check
        %p785 = pneg %p189
      $region58: #{_lambda_.1} parent=39 // pred_check_branch
        %787 = sbr.rel (%p785) target = $region60
      $region59: #{_lambda_.1} parent=39 // pred_region
        _
      $region60: #{_lambda_.1} parent=39 // pred_fallthru
        _
      // Predicated region
      $region61: #{_lambda_.1} parent=39 // pred_check
        %p788 = pneg %p168
      $region62: #{_lambda_.1} parent=39 // pred_check_branch
        %790 = sbr.rel (%p788) target = $region64
      $region63: #{_lambda_.1} parent=39 // pred_region
        _
      $region64: #{_lambda_.1} parent=39 // pred_fallthru
        _
      // Predicated region
      $region65: #{_lambda_.1} parent=39 // pred_check
        %p791 = pneg %p189
      $region66: #{_lambda_.1} parent=39 // pred_check_branch
        %793 = sbr.rel (%p791) target = $region68
      $region67: #{_lambda_.1} parent=39 // pred_region
        _
      $region68: #{_lambda_.1} parent=39 // pred_fallthru
        _
    $region40: #{_lambda_.1} parent=5 // pred_fallthru
      _
    %p794 = scmp.le.s32.totalorder 2, %s14
    // Predicated region
    $region69: #{_lambda_.1} parent=5 // pred_check
      %p795 = pneg %p794
    $region70: #{_lambda_.1} parent=5 // pred_check_branch
      %797 = sbr.rel (%p795) target = $region72
    $region71: #{_lambda_.1} parent=5 // pred_region
      %s798 = ssub.s32 %s14, 2
      // Predicated region
      $region73: #{_lambda_.1} parent=71 // pred_check
        %p799 = pneg %p153
      $region74: #{_lambda_.1} parent=71 // pred_check_branch
        %801 = sbr.rel (%p799) target = $region76
      $region75: #{_lambda_.1} parent=71 // pred_region
        %s802 = smul.u32 4, %s20
        %p803 = scmp.lt.s32.totalorder %s802, 7
        %s804 = scalar_select %p803, %s802, 7
        %s805 = smul.addr %s804, 8
        %s806 = scalar_lea.vmem %s5, %s805
      $region76: #{_lambda_.1} parent=71 // pred_fallthru
        _
    $region72: #{_lambda_.1} parent=5 // pred_fallthru
      _
  $region6: #{_lambda_.1} parent=0 // loop_footer
    %s18 = sadd.s32 1, %s14
  $region7: #{_lambda_.1} parent=0 // loop_footer_branch
    %13 = sbr.rel target = $region3
  $region8: #{_lambda_.1} parent=0 // loop_exit
    _

</llo_original>
